<compile_context>
chip_gen: v5e
topology: v5e:2x2
jax: 0.10.0
libtpu: 0.0.40
codegen_flags: <defaults>
</compile_context>

<pallas_src>
import numpy as np
import jax
import jax.numpy as jnp
from jax import lax
from jax.experimental import pallas as pl
from jax.experimental.pallas import tpu as pltpu


def _make_dws_kernel(KH, KW, pad, H, W, C, tco, use_mxu, halo):
    HW = H * W
    taps = [(kh, kw) for kh in range(KH) for kw in range(KW)]

    def kernel(x_ref, mask_ref, wdw_ref, dwb_ref, wpw_ref, pwb_ref, o_ref, xbuf_ref):
        # x_ref   : (1, C, H*W)          one image, channels x flattened spatial (lane-dense)
        # mask_ref: (KH*KW, H*W)         f32 {0,1} zero-padding validity mask per tap
        # wdw_ref : (C, KH*KW)           depthwise weights, BN scale folded in
        # dwb_ref : (C, 1)               depthwise BN shift
        # wpw_ref : (tco, C)             pointwise weights (one Cout tile), BN scale folded in
        # pwb_ref : (tco, 1)             pointwise BN shift
        # o_ref   : (1, tco, H*W)
        # xbuf_ref: (C, halo + H*W + halo)  flat image with zero halos (in-kernel padding)

        x = x_ref[0].astype(jnp.float32)                                # (C, HW)

        # ---- in-kernel zero padding (no extra HBM pass in the wrapper) ----
        if halo > 0:
            zero_strip = jnp.zeros((C, halo), jnp.float32)
            xbuf_ref[:, 0:halo] = zero_strip                            # left halo  (aligned)
            xbuf_ref[:, halo + HW:halo + HW + halo] = zero_strip        # right halo
        xbuf_ref[:, halo:halo + HW] = x                                 # interior   (aligned)

        # ---- depthwise conv: KH*KW static shifted windows, fully lane-dense ----
        acc = jnp.zeros((C, HW), jnp.float32)
        for t, (kh, kw) in enumerate(taps):
            d = (kh - pad) * W + (kw - pad)                             # flat tap offset (stride 1)
            win = xbuf_ref[:, halo + d:halo + d + HW]                   # (C, HW)
            if kw != pad:                                               # only row-crossing taps need a mask
                win = win * mask_ref[t:t + 1, :]
            acc = acc + win * wdw_ref[:, t:t + 1]                       # per-channel scalar, lane-broadcast
        dw = jnp.maximum(acc + dwb_ref[...], 0.0)                       # BN shift + ReLU, (C, HW)

        # ---- pointwise 1x1 conv ----
        if use_mxu:
            # (tco, C) @ (C, HW) on the MXU with f32 accumulation.
            y = jnp.dot(wpw_ref[...], dw, preferred_element_type=jnp.float32)
        else:
            # Tiny C*Cout (test sizes): the MXU would be ~1% utilized; use VPU broadcast-MACs.
            y = jnp.zeros((tco, HW), jnp.float32)
            for c in range(C):                                          # C is small on this path
                y = y + wpw_ref[:, c:c + 1] * dw[c:c + 1, :]
        y = jnp.maximum(y + pwb_ref[...], 0.0)                          # BN shift + ReLU

        o_ref[0] = y.astype(o_ref.dtype)                                # lane-dense store

    return kernel


def dws_conv_block(x_nchw, params, *, kernel_size=3, stride=1, padding=1, bn_eps=1e-5,
                   cout_tile=None):
    """Pallas implementation of DwsConvBlock.forward (inference). Input/output are NCHW."""
    KH = KW = kernel_size
    pad = padding
    assert stride == 1 and 2 * pad == kernel_size - 1, (
        "Pallas fast path implements the stride-1 'same' depthwise conv (2*pad == k-1).")
    # TODO(synk): stride>1 / asymmetric padding / dilation need an H-strip halo pipeline.

    (w_dw, g_dw, b_dw, m_dw, v_dw, w_pw, g_pw, b_pw, m_pw, v_pw) = params
    N, C, H, W = x_nchw.shape
    Cout = w_pw.shape[0]
    HW = H * W
    f32 = jnp.float32

    # Cout tiling: second parallel grid axis (keeps both v7x TensorCores busy even at N<=2).
    if cout_tile is None:
        cout_tile = Cout
        for cand in (256, 128):
            if Cout > cand and Cout % cand == 0:
                cout_tile = cand
                break
    assert Cout % cout_tile == 0
    n_cout_tiles = Cout // cout_tile

    # ---- fold inference-mode BN scales into the conv weights; keep additive shifts only ----
    dw_scale = g_dw / jnp.sqrt(v_dw + bn_eps)                                   # (C,)
    pw_scale = g_pw / jnp.sqrt(v_pw + bn_eps)                                   # (Cout,)
    wdw = (w_dw[:, 0, :, :] * dw_scale[:, None, None]).reshape(C, KH * KW).astype(f32)
    dwb = (b_dw - m_dw * dw_scale).reshape(C, 1).astype(f32)
    wpw = (w_pw[:, :, 0, 0] * pw_scale[:, None]).astype(f32)                    # (Cout, C)
    pwb = (b_pw - m_pw * pw_scale).reshape(Cout, 1).astype(f32)

    # ---- per-tap zero-padding validity masks (host-side, tiny) ----
    hh = np.arange(H)[:, None]
    ww = np.arange(W)[None, :]
    masks = np.empty((KH * KW, HW), np.float32)
    for t in range(KH * KW):
        kh, kw = divmod(t, KW)
        valid = ((hh + kh - pad >= 0) & (hh + kh - pad < H) &
                 (ww + kw - pad >= 0) & (ww + kw - pad < W))
        masks[t] = valid.reshape(-1)
    masks = jnp.asarray(masks)

    # NCHW -> (N, C, H*W): free metadata reshape; spatial axis becomes the (lane-dense) minor axis.
    x_flat = x_nchw.reshape(N, C, HW)

    # Flat halo width: >= pad*W + pad, rounded up to 128 so the interior scratch store is aligned.
    P = pad * W + pad
    halo = ((P + 127) // 128) * 128 if P > 0 else 0

    use_mxu = (C * Cout) >= 1024   # MXU pointwise only when the matmul is non-trivial

    kernel = _make_dws_kernel(KH, KW, pad, H, W, C, cout_tile, use_mxu, halo)

    out_flat = pl.pallas_call(
        kernel,
        out_shape=jax.ShapeDtypeStruct((N, Cout, HW), x_nchw.dtype),
        grid=(N, n_cout_tiles),
        in_specs=[
            pl.BlockSpec((1, C, HW), lambda b, j: (b, 0, 0)),
            pl.BlockSpec((KH * KW, HW), lambda b, j: (0, 0)),
            pl.BlockSpec((C, KH * KW), lambda b, j: (0, 0)),
            pl.BlockSpec((C, 1), lambda b, j: (0, 0)),
            pl.BlockSpec((cout_tile, C), lambda b, j: (j, 0)),
            pl.BlockSpec((cout_tile, 1), lambda b, j: (j, 0)),
        ],
        out_specs=pl.BlockSpec((1, cout_tile, HW), lambda b, j: (b, j, 0)),
        scratch_shapes=[pltpu.VMEM((C, halo + HW + halo), f32)],
        compiler_params=pltpu.CompilerParams(
            dimension_semantics=("parallel", "parallel"),
            vmem_limit_bytes=32 * 1024 * 1024,
        ),
    )(x_flat, masks, wdw, dwb, wpw, pwb)

    return out_flat.reshape(N, Cout, H, W)   # free metadata reshape back to NCHW


def reference_forward(x_nchw, params, *, kernel_size=3, stride=1, padding=1, bn_eps=1e-5):
    """Pure-JAX reference matching PyTorch semantics (dw conv + BN + ReLU, 1x1 conv + BN + ReLU)."""
    (w_dw, g_dw, b_dw, m_dw, v_dw, w_pw, g_pw, b_pw, m_pw, v_pw) = params
    C = x_nchw.shape[1]

    y = lax.conv_general_dilated(
        x_nchw, w_dw, window_strides=(stride, stride),
        padding=((padding, padding), (padding, padding)),
        dimension_numbers=("NCHW", "OIHW", "NCHW"), feature_group_count=C)
    y = (y - m_dw[None, :, None, None]) / jnp.sqrt(v_dw + bn_eps)[None, :, None, None]
    y = y * g_dw[None, :, None, None] + b_dw[None, :, None, None]
    y = jnp.maximum(y, 0.0)

    z = lax.conv_general_dilated(
        y, w_pw, window_strides=(1, 1), padding="VALID",
        dimension_numbers=("NCHW", "OIHW", "NCHW"))
    z = (z - m_pw[None, :, None, None]) / jnp.sqrt(v_pw + bn_eps)[None, :, None, None]
    z = z * g_pw[None, :, None, None] + b_pw[None, :, None, None]
    z = jnp.maximum(z, 0.0)
    return z


if __name__ == "__main__":
    # Small shapes consistent with the module: NCHW input, 3x3 depthwise, stride 1, padding 1.
    N, C, H, W = 2, 4, 16, 16
    Cout = 8
    KH = KW = 3

    key = jax.random.PRNGKey(0)
    keys = jax.random.split(key, 9)

    x = jax.random.normal(keys[0], (N, C, H, W), jnp.float32)

    # Parameter shapes follow the PyTorch module:
    #   dw_conv.conv.weight: (C, 1, KH, KW), groups=C, bias=False
    #   dw_conv.bn: gamma/beta/running_mean/running_var of shape (C,)
    #   pw_conv.conv.weight: (Cout, C, 1, 1), bias=False
    #   pw_conv.bn: gamma/beta/running_mean/running_var of shape (Cout,)
    w_dw = jax.random.normal(keys[1], (C, 1, KH, KW), jnp.float32) * 0.3
    g_dw = jax.random.normal(keys[2], (C,), jnp.float32) * 0.1 + 1.0
    b_dw = jax.random.normal(keys[3], (C,), jnp.float32) * 0.1
    m_dw = jax.random.normal(keys[4], (C,), jnp.float32) * 0.1
    v_dw = jnp.abs(jax.random.normal(keys[5], (C,), jnp.float32)) * 0.2 + 0.8

    w_pw = jax.random.normal(keys[6], (Cout, C, 1, 1), jnp.float32) * 0.3
    g_pw = jax.random.normal(keys[7], (Cout,), jnp.float32) * 0.1 + 1.0
    b_pw = jax.random.normal(keys[8], (Cout,), jnp.float32) * 0.1
    m_pw = jnp.linspace(-0.1, 0.1, Cout, dtype=jnp.float32)
    v_pw = jnp.linspace(0.8, 1.2, Cout, dtype=jnp.float32)

    params = (w_dw, g_dw, b_dw, m_dw, v_dw, w_pw, g_pw, b_pw, m_pw, v_pw)

    out = dws_conv_block(x, params, kernel_size=3, stride=1, padding=1, bn_eps=1e-5)
    out = jax.block_until_ready(out)

    ref = jax.block_until_ready(
        reference_forward(x, params, kernel_size=3, stride=1, padding=1, bn_eps=1e-5))

    assert out.shape == (N, Cout, H, W), out.shape
    np.testing.assert_allclose(np.asarray(out), np.asarray(ref), atol=1e-4, rtol=1e-4)
    print("KERNEL_OK")
</pallas_src>

<mosaic_0001>
module attributes {stable_mosaic.version = 11 : i64} {
  func.func @kernel(%arg0: i32, %arg1: i32, %arg2: memref<1x4x256xf32, #tpu.memory_space<vmem>>, %arg3: memref<9x256xf32, #tpu.memory_space<vmem>>, %arg4: memref<4x9xf32, #tpu.memory_space<vmem>>, %arg5: memref<4x1xf32, #tpu.memory_space<vmem>>, %arg6: memref<8x4xf32, #tpu.memory_space<vmem>>, %arg7: memref<8x1xf32, #tpu.memory_space<vmem>>, %arg8: memref<1x8x256xf32, #tpu.memory_space<vmem>>, %arg9: memref<4x512xf32, #tpu.memory_space<vmem>>) attributes {dimension_semantics = [#tpu.dimension_semantics<parallel>, #tpu.dimension_semantics<parallel>], iteration_bounds = array<i64: 2, 1>, scalar_prefetch = 0 : i64, scratch_operands = 1 : i64, tpu.core_type = #tpu.core_type<tc>, window_params = [{transform_indices = @transform_0, window_bounds = array<i64: 1, 4, 256>}, {pipeline_mode = #tpu.pipeline_mode<synchronous>, transform_indices = @transform_1, window_bounds = array<i64: 9, 256>}, {pipeline_mode = #tpu.pipeline_mode<synchronous>, transform_indices = @transform_2, window_bounds = array<i64: 4, 9>}, {pipeline_mode = #tpu.pipeline_mode<synchronous>, transform_indices = @transform_3, window_bounds = array<i64: 4, 1>}, {transform_indices = @transform_4, window_bounds = array<i64: 8, 4>}, {transform_indices = @transform_5, window_bounds = array<i64: 8, 1>}, {transform_indices = @transform_6, window_bounds = array<i64: 1, 8, 256>}]} {
    %c0 = arith.constant 0 : index
    %c0_0 = arith.constant 0 : index
    %c0_1 = arith.constant 0 : index
    %0 = vector.load %arg2[%c0, %c0_0, %c0_1] : memref<1x4x256xf32, #tpu.memory_space<vmem>>, vector<1x4x256xf32>
    %1 = vector.shape_cast %0 : vector<1x4x256xf32> to vector<4x256xf32>
    %cst = arith.constant 0.000000e+00 : f32
    %2 = vector.broadcast %cst : f32 to vector<4x128xf32>
    %c0_2 = arith.constant 0 : index
    %c0_3 = arith.constant 0 : index
    %3 = vector.load %arg9[%c0_2, %c0_3] : memref<4x512xf32, #tpu.memory_space<vmem>>, vector<4x128xf32>
    tpu.vector_store %arg9[%c0_2, %c0_3], %2 {strides = array<i32>} : memref<4x512xf32, #tpu.memory_space<vmem>>, vector<4x128xf32>,
    %c0_4 = arith.constant 0 : index
    %c384 = arith.constant 384 : index
    %4 = vector.load %arg9[%c0_4, %c384] : memref<4x512xf32, #tpu.memory_space<vmem>>, vector<4x128xf32>
    tpu.vector_store %arg9[%c0_4, %c384], %2 {strides = array<i32>} : memref<4x512xf32, #tpu.memory_space<vmem>>, vector<4x128xf32>,
    %c0_5 = arith.constant 0 : index
    %c128 = arith.constant 128 : index
    %5 = vector.load %arg9[%c0_5, %c128] : memref<4x512xf32, #tpu.memory_space<vmem>>, vector<4x256xf32>
    tpu.vector_store %arg9[%c0_5, %c128], %1 {strides = array<i32>} : memref<4x512xf32, #tpu.memory_space<vmem>>, vector<4x256xf32>,
    %cst_6 = arith.constant 0.000000e+00 : f32
    %6 = vector.broadcast %cst_6 : f32 to vector<4x256xf32>
    %c0_7 = arith.constant 0 : index
    %c111 = arith.constant 111 : index
    %7 = vector.load %arg9[%c0_7, %c111] : memref<4x512xf32, #tpu.memory_space<vmem>>, vector<4x256xf32>
    %c0_8 = arith.constant 0 : index
    %c0_9 = arith.constant 0 : index
    %8 = vector.load %arg3[%c0_8, %c0_9] : memref<9x256xf32, #tpu.memory_space<vmem>>, vector<1x256xf32>
    %9 = vector.broadcast %8 : vector<1x256xf32> to vector<4x256xf32>
    %10 = arith.mulf %7, %9 : vector<4x256xf32>
    %c0_10 = arith.constant 0 : index
    %c0_11 = arith.constant 0 : index
    %11 = vector.load %arg4[%c0_10, %c0_11] : memref<4x9xf32, #tpu.memory_space<vmem>>, vector<4x1xf32>
    %12 = vector.broadcast %11 : vector<4x1xf32> to vector<4x256xf32>
    %13 = arith.mulf %10, %12 : vector<4x256xf32>
    %14 = arith.addf %6, %13 : vector<4x256xf32>
    %c0_12 = arith.constant 0 : index
    %c112 = arith.constant 112 : index
    %15 = vector.load %arg9[%c0_12, %c112] : memref<4x512xf32, #tpu.memory_space<vmem>>, vector<4x256xf32>
    %c0_13 = arith.constant 0 : index
    %c1 = arith.constant 1 : index
    %16 = vector.load %arg4[%c0_13, %c1] : memref<4x9xf32, #tpu.memory_space<vmem>>, vector<4x1xf32>
    %17 = vector.broadcast %16 : vector<4x1xf32> to vector<4x256xf32>
    %18 = arith.mulf %15, %17 : vector<4x256xf32>
    %19 = arith.addf %14, %18 : vector<4x256xf32>
    %c0_14 = arith.constant 0 : index
    %c113 = arith.constant 113 : index
    %20 = vector.load %arg9[%c0_14, %c113] : memref<4x512xf32, #tpu.memory_space<vmem>>, vector<4x256xf32>
    %c2 = arith.constant 2 : index
    %c0_15 = arith.constant 0 : index
    %21 = vector.load %arg3[%c2, %c0_15] : memref<9x256xf32, #tpu.memory_space<vmem>>, vector<1x256xf32>
    %22 = vector.broadcast %21 : vector<1x256xf32> to vector<4x256xf32>
    %23 = arith.mulf %20, %22 : vector<4x256xf32>
    %c0_16 = arith.constant 0 : index
    %c2_17 = arith.constant 2 : index
    %24 = vector.load %arg4[%c0_16, %c2_17] : memref<4x9xf32, #tpu.memory_space<vmem>>, vector<4x1xf32>
    %25 = vector.broadcast %24 : vector<4x1xf32> to vector<4x256xf32>
    %26 = arith.mulf %23, %25 : vector<4x256xf32>
    %27 = arith.addf %19, %26 : vector<4x256xf32>
    %c0_18 = arith.constant 0 : index
    %c127 = arith.constant 127 : index
    %28 = vector.load %arg9[%c0_18, %c127] : memref<4x512xf32, #tpu.memory_space<vmem>>, vector<4x256xf32>
    %c3 = arith.constant 3 : index
    %c0_19 = arith.constant 0 : index
    %29 = vector.load %arg3[%c3, %c0_19] : memref<9x256xf32, #tpu.memory_space<vmem>>, vector<1x256xf32>
    %30 = vector.broadcast %29 : vector<1x256xf32> to vector<4x256xf32>
    %31 = arith.mulf %28, %30 : vector<4x256xf32>
    %c0_20 = arith.constant 0 : index
    %c3_21 = arith.constant 3 : index
    %32 = vector.load %arg4[%c0_20, %c3_21] : memref<4x9xf32, #tpu.memory_space<vmem>>, vector<4x1xf32>
    %33 = vector.broadcast %32 : vector<4x1xf32> to vector<4x256xf32>
    %34 = arith.mulf %31, %33 : vector<4x256xf32>
    %35 = arith.addf %27, %34 : vector<4x256xf32>
    %c0_22 = arith.constant 0 : index
    %c128_23 = arith.constant 128 : index
    %36 = vector.load %arg9[%c0_22, %c128_23] : memref<4x512xf32, #tpu.memory_space<vmem>>, vector<4x256xf32>
    %c0_24 = arith.constant 0 : index
    %c4 = arith.constant 4 : index
    %37 = vector.load %arg4[%c0_24, %c4] : memref<4x9xf32, #tpu.memory_space<vmem>>, vector<4x1xf32>
    %38 = vector.broadcast %37 : vector<4x1xf32> to vector<4x256xf32>
    %39 = arith.mulf %36, %38 : vector<4x256xf32>
    %40 = arith.addf %35, %39 : vector<4x256xf32>
    %c0_25 = arith.constant 0 : index
    %c129 = arith.constant 129 : index
    %41 = vector.load %arg9[%c0_25, %c129] : memref<4x512xf32, #tpu.memory_space<vmem>>, vector<4x256xf32>
    %c5 = arith.constant 5 : index
    %c0_26 = arith.constant 0 : index
    %42 = vector.load %arg3[%c5, %c0_26] : memref<9x256xf32, #tpu.memory_space<vmem>>, vector<1x256xf32>
    %43 = vector.broadcast %42 : vector<1x256xf32> to vector<4x256xf32>
    %44 = arith.mulf %41, %43 : vector<4x256xf32>
    %c0_27 = arith.constant 0 : index
    %c5_28 = arith.constant 5 : index
    %45 = vector.load %arg4[%c0_27, %c5_28] : memref<4x9xf32, #tpu.memory_space<vmem>>, vector<4x1xf32>
    %46 = vector.broadcast %45 : vector<4x1xf32> to vector<4x256xf32>
    %47 = arith.mulf %44, %46 : vector<4x256xf32>
    %48 = arith.addf %40, %47 : vector<4x256xf32>
    %c0_29 = arith.constant 0 : index
    %c143 = arith.constant 143 : index
    %49 = vector.load %arg9[%c0_29, %c143] : memref<4x512xf32, #tpu.memory_space<vmem>>, vector<4x256xf32>
    %c6 = arith.constant 6 : index
    %c0_30 = arith.constant 0 : index
    %50 = vector.load %arg3[%c6, %c0_30] : memref<9x256xf32, #tpu.memory_space<vmem>>, vector<1x256xf32>
    %51 = vector.broadcast %50 : vector<1x256xf32> to vector<4x256xf32>
    %52 = arith.mulf %49, %51 : vector<4x256xf32>
    %c0_31 = arith.constant 0 : index
    %c6_32 = arith.constant 6 : index
    %53 = vector.load %arg4[%c0_31, %c6_32] : memref<4x9xf32, #tpu.memory_space<vmem>>, vector<4x1xf32>
    %54 = vector.broadcast %53 : vector<4x1xf32> to vector<4x256xf32>
    %55 = arith.mulf %52, %54 : vector<4x256xf32>
    %56 = arith.addf %48, %55 : vector<4x256xf32>
    %c0_33 = arith.constant 0 : index
    %c144 = arith.constant 144 : index
    %57 = vector.load %arg9[%c0_33, %c144] : memref<4x512xf32, #tpu.memory_space<vmem>>, vector<4x256xf32>
    %c0_34 = arith.constant 0 : index
    %c7 = arith.constant 7 : index
    %58 = vector.load %arg4[%c0_34, %c7] : memref<4x9xf32, #tpu.memory_space<vmem>>, vector<4x1xf32>
    %59 = vector.broadcast %58 : vector<4x1xf32> to vector<4x256xf32>
    %60 = arith.mulf %57, %59 : vector<4x256xf32>
    %61 = arith.addf %56, %60 : vector<4x256xf32>
    %c0_35 = arith.constant 0 : index
    %c145 = arith.constant 145 : index
    %62 = vector.load %arg9[%c0_35, %c145] : memref<4x512xf32, #tpu.memory_space<vmem>>, vector<4x256xf32>
    %c8 = arith.constant 8 : index
    %c0_36 = arith.constant 0 : index
    %63 = vector.load %arg3[%c8, %c0_36] : memref<9x256xf32, #tpu.memory_space<vmem>>, vector<1x256xf32>
    %64 = vector.broadcast %63 : vector<1x256xf32> to vector<4x256xf32>
    %65 = arith.mulf %62, %64 : vector<4x256xf32>
    %c0_37 = arith.constant 0 : index
    %c8_38 = arith.constant 8 : index
    %66 = vector.load %arg4[%c0_37, %c8_38] : memref<4x9xf32, #tpu.memory_space<vmem>>, vector<4x1xf32>
    %67 = vector.broadcast %66 : vector<4x1xf32> to vector<4x256xf32>
    %68 = arith.mulf %65, %67 : vector<4x256xf32>
    %69 = arith.addf %61, %68 : vector<4x256xf32>
    %c0_39 = arith.constant 0 : index
    %c0_40 = arith.constant 0 : index
    %70 = vector.load %arg5[%c0_39, %c0_40] : memref<4x1xf32, #tpu.memory_space<vmem>>, vector<4x1xf32>
    %71 = vector.broadcast %70 : vector<4x1xf32> to vector<4x256xf32>
    %72 = arith.addf %69, %71 : vector<4x256xf32>
    %cst_41 = arith.constant 0.000000e+00 : f32
    %73 = vector.broadcast %cst_41 : f32 to vector<4x256xf32>
    %74 = arith.maximumf %72, %73 : vector<4x256xf32>
    %cst_42 = arith.constant 0.000000e+00 : f32
    %75 = vector.broadcast %cst_42 : f32 to vector<8x256xf32>
    %c0_43 = arith.constant 0 : index
    %c0_44 = arith.constant 0 : index
    %76 = vector.load %arg6[%c0_43, %c0_44] : memref<8x4xf32, #tpu.memory_space<vmem>>, vector<8x1xf32>
    %77 = vector.extract_strided_slice %74 {offsets = [0, 0], sizes = [1, 256], strides = [1, 1]} : vector<4x256xf32> to vector<1x256xf32>
    %78 = vector.broadcast %76 : vector<8x1xf32> to vector<8x256xf32>
    %79 = vector.broadcast %77 : vector<1x256xf32> to vector<8x256xf32>
    %80 = arith.mulf %78, %79 : vector<8x256xf32>
    %81 = arith.addf %75, %80 : vector<8x256xf32>
    %c0_45 = arith.constant 0 : index
    %c1_46 = arith.constant 1 : index
    %82 = vector.load %arg6[%c0_45, %c1_46] : memref<8x4xf32, #tpu.memory_space<vmem>>, vector<8x1xf32>
    %83 = vector.extract_strided_slice %74 {offsets = [1, 0], sizes = [1, 256], strides = [1, 1]} : vector<4x256xf32> to vector<1x256xf32>
    %84 = vector.broadcast %82 : vector<8x1xf32> to vector<8x256xf32>
    %85 = vector.broadcast %83 : vector<1x256xf32> to vector<8x256xf32>
    %86 = arith.mulf %84, %85 : vector<8x256xf32>
    %87 = arith.addf %81, %86 : vector<8x256xf32>
    %c0_47 = arith.constant 0 : index
    %c2_48 = arith.constant 2 : index
    %88 = vector.load %arg6[%c0_47, %c2_48] : memref<8x4xf32, #tpu.memory_space<vmem>>, vector<8x1xf32>
    %89 = vector.extract_strided_slice %74 {offsets = [2, 0], sizes = [1, 256], strides = [1, 1]} : vector<4x256xf32> to vector<1x256xf32>
    %90 = vector.broadcast %88 : vector<8x1xf32> to vector<8x256xf32>
    %91 = vector.broadcast %89 : vector<1x256xf32> to vector<8x256xf32>
    %92 = arith.mulf %90, %91 : vector<8x256xf32>
    %93 = arith.addf %87, %92 : vector<8x256xf32>
    %c0_49 = arith.constant 0 : index
    %c3_50 = arith.constant 3 : index
    %94 = vector.load %arg6[%c0_49, %c3_50] : memref<8x4xf32, #tpu.memory_space<vmem>>, vector<8x1xf32>
    %95 = vector.extract_strided_slice %74 {offsets = [3, 0], sizes = [1, 256], strides = [1, 1]} : vector<4x256xf32> to vector<1x256xf32>
    %96 = vector.broadcast %94 : vector<8x1xf32> to vector<8x256xf32>
    %97 = vector.broadcast %95 : vector<1x256xf32> to vector<8x256xf32>
    %98 = arith.mulf %96, %97 : vector<8x256xf32>
    %99 = arith.addf %93, %98 : vector<8x256xf32>
    %c0_51 = arith.constant 0 : index
    %c0_52 = arith.constant 0 : index
    %100 = vector.load %arg7[%c0_51, %c0_52] : memref<8x1xf32, #tpu.memory_space<vmem>>, vector<8x1xf32>
    %101 = vector.broadcast %100 : vector<8x1xf32> to vector<8x256xf32>
    %102 = arith.addf %99, %101 : vector<8x256xf32>
    %cst_53 = arith.constant 0.000000e+00 : f32
    %103 = vector.broadcast %cst_53 : f32 to vector<8x256xf32>
    %104 = arith.maximumf %102, %103 : vector<8x256xf32>
    %c0_54 = arith.constant 0 : index
    %c0_55 = arith.constant 0 : index
    %c0_56 = arith.constant 0 : index
    %105 = vector.load %arg8[%c0_54, %c0_55, %c0_56] : memref<1x8x256xf32, #tpu.memory_space<vmem>>, vector<1x8x256xf32>
    %106 = vector.shape_cast %105 : vector<1x8x256xf32> to vector<8x256xf32>
    %107 = vector.shape_cast %104 : vector<8x256xf32> to vector<1x8x256xf32>
    tpu.vector_store %arg8[%c0_54, %c0_55, %c0_56], %107 {strides = array<i32>} : memref<1x8x256xf32, #tpu.memory_space<vmem>>, vector<1x8x256xf32>,
    return
  }
  func.func @transform_0(%arg0: i32, %arg1: i32) -> (i32, i32, i32) {
    %c0_i32 = arith.constant 0 : i32
    %c0_i32_0 = arith.constant 0 : i32
    %c0_i32_1 = arith.constant 0 : i32
    return %arg0, %c0_i32, %c0_i32_0 : i32, i32, i32
  }
  func.func @transform_1(%arg0: i32, %arg1: i32) -> (i32, i32) {
    %c0_i32 = arith.constant 0 : i32
    %c0_i32_0 = arith.constant 0 : i32
    %c0_i32_1 = arith.constant 0 : i32
    return %c0_i32, %c0_i32_0 : i32, i32
  }
  func.func @transform_2(%arg0: i32, %arg1: i32) -> (i32, i32) {
    %c0_i32 = arith.constant 0 : i32
    %c0_i32_0 = arith.constant 0 : i32
    %c0_i32_1 = arith.constant 0 : i32
    return %c0_i32, %c0_i32_0 : i32, i32
  }
  func.func @transform_3(%arg0: i32, %arg1: i32) -> (i32, i32) {
    %c0_i32 = arith.constant 0 : i32
    %c0_i32_0 = arith.constant 0 : i32
    %c0_i32_1 = arith.constant 0 : i32
    return %c0_i32, %c0_i32_0 : i32, i32
  }
  func.func @transform_4(%arg0: i32, %arg1: i32) -> (i32, i32) {
    %c0_i32 = arith.constant 0 : i32
    %c0_i32_0 = arith.constant 0 : i32
    return %arg1, %c0_i32 : i32, i32
  }
  func.func @transform_5(%arg0: i32, %arg1: i32) -> (i32, i32) {
    %c0_i32 = arith.constant 0 : i32
    %c0_i32_0 = arith.constant 0 : i32
    return %arg1, %c0_i32 : i32, i32
  }
  func.func @transform_6(%arg0: i32, %arg1: i32) -> (i32, i32, i32) {
    %c0_i32 = arith.constant 0 : i32
    %c0_i32_0 = arith.constant 0 : i32
    return %arg0, %arg1, %c0_i32 : i32, i32, i32
  }
}

</mosaic_0001>

<llo_original>
// kernel: tpu_custom_call.1
$region0: #{tpu_custom_call.1}
  #allocation0 [shape = 'u32[]', space=smem, size = 0x4, offset = 0x4, fixed_abs, tag = 'smem constant byte address 0x4 - core index']
  #allocation1 [shape = 'u32[72,128]{1,0:T(1,128)}', space=vmem, size = 0x9000, scoped, tag = 'internal scratch']
  #allocation2 [shape = 'f32[4,512]{1,0:T(4,128)}', space=vmem, size = 0x2000, scoped, tag = 'scratch operand']
  %s0 = inlined_call_operand.vmem [shape: f32[2,4,256], index: 0, kind: input, shape index: {}]
  %s1 = inlined_call_operand.hbm [shape: f32[9,256], index: 1, kind: input, shape index: {}]
  %s2 = inlined_call_operand.vmem [shape: f32[4,9], index: 2, kind: input, shape index: {}]
  %s3 = inlined_call_operand.vmem [shape: f32[4,1], index: 3, kind: input, shape index: {}]
  %s4 = inlined_call_operand.vmem [shape: f32[8,4], index: 4, kind: input, shape index: {}]
  %s5 = inlined_call_operand.vmem [shape: f32[8,1], index: 5, kind: input, shape index: {}]
  %s6 = inlined_call_operand.hbm [shape: f32[2,8,256], index: 6, kind: output, shape index: {}]
  %s7 = sld [smem:[#allocation0]]
  $region61: #{tpu_custom_call.1} parent=0
    _
  %s9 = ssub.s32 1, %s7
  %s10 = scalar_select 0, %s9, %s7
  $region1: #{tpu_custom_call.1} parent=0
    #allocation3 [shape = 'u8[16384]{0}', space=vmem, size = 0x4000, scoped, tag = 'input window, operand 1, single buffered']
    #allocation4 [shape = 's32[2]{0}', space=sflag, size = 0x8, scoped, tag = 'scoped memory for tpu_custom_call.1']
    #allocation5 [shape = 's32[2]{0}', space=sflag, size = 0x8, scoped, tag = 'scoped memory for tpu_custom_call.1']
    #allocation6 [shape = 'u8[16384]{0}', space=vmem, size = 0x4000, scoped, tag = 'output window, operand 0']
    %11 = vsyncpa [#allocation4], 0
    %12 = vsyncpa [#allocation5], 0
    %s13 = scalar_lea.sflag [#allocation5], 1
    %14 = vsyncpa %s13, 0
    loop: start=0, step=1, limit=4
    $region2: #{tpu_custom_call.1} parent=1 // loop_pre_header
      _
    $region3: #{tpu_custom_call.1} parent=1 // loop_header
      %s16 = sphi 0, %s20
      %p17 = scmp.ge.s32.totalorder %s16, 4
      %s23 = sphi 0, %s35
      %s24 = sphi 0, %s31
      %s25 = sphi 0, %s23
      %s26 = sphi 0, %s24
      %s27 = sphi 0, %s25
      %s28 = sphi 0, %s26
      %s38 = sphi 0, %s40
      %s41 = sphi 0, %s38
      %s42 = sphi 0, %s41
      %s58 = sphi 0, %s42
      %s62 = sphi 0, %s62
      %s64 = sphi 0, %s62
      %s65 = sphi 0, %s64
      %s79 = sphi 0, %s65
      %s83 = sphi 0, %s83
      %s85 = sphi 0, %s83
      %s86 = sphi 0, %s85
      %s100 = sphi 0, %s86
      %s104 = sphi 0, %s104
      %s106 = sphi 0, %s104
      %s107 = sphi 0, %s106
      %s121 = sphi 0, %s107
      %s127 = sphi 0, %s129
      %s130 = sphi 0, %s127
      %s131 = sphi 0, %s130
      %s147 = sphi 0, %s131
      %s153 = sphi 0, %s155
      %s156 = sphi 0, %s153
      %s157 = sphi 0, %s156
      %s173 = sphi 0, %s157
      %s181 = sphi 0, %s183
      %s184 = sphi 0, %s181
      %s185 = sphi 0, %s184
      %s201 = sphi 0, %s185
    $region4: #{tpu_custom_call.1} parent=1 // loop_header_branch
      %19 = sbr.rel (%p17) target = $region8
    $region5: #{tpu_custom_call.1} parent=1 // loop_body
      %s21 = ssub.s32 %s16, 1
      %s22 = ssub.s32 %s16, 2
      %s29 = sadd.s32 1, %s24
      %p30 = scmp.ge.s32.totalorder %s29, 1
      %s31 = scalar_select %p30, 0, %s29
      %s32 = sadd.s32 1, %s23
      %s33 = scalar_select %p30, %s32, %s23
      %p34 = scmp.ge.s32.totalorder %s33, 2
      %s35 = scalar_select %p34, 0, %s33
      %s36 = ssub.s32 %s23, %s35
      %p37 = scmp.eq.s32.totalorder %s36, 0
      %s39 = sadd.s32 %s38, 1
      %s40 = scalar_select %p37, %s38, %s39
      %p43 = pneg %p37
      %p44 = scmp.eq.s32.totalorder %s16, 1
      %p45 = por %p43, %p44
      %p46 = scmp.ne.s32.totalorder %s38, %s41
      %p47 = scmp.eq.s32.totalorder %s16, 0
      %p48 = por %p46, %p47
      %p49 = scmp.ne.s32.totalorder %s38, %s41
      %p50 = scmp.eq.s32.totalorder %s21, 1
      %p51 = por %p49, %p50
      %p52 = scmp.ne.s32.totalorder %s41, %s42
      %p53 = scmp.eq.s32.totalorder %s21, 0
      %p54 = por %p52, %p53
      %p55 = scmp.ne.s32.totalorder %s41, %s42
      %p56 = scmp.eq.s32.totalorder %s22, 1
      %p57 = por %p55, %p56
      %p59 = scmp.ne.s32.totalorder %s42, %s58
      %p60 = scmp.eq.s32.totalorder %s22, 0
      %p61 = por %p59, %p60
      %s63 = sadd.s32 %s62, 1
      %p66 = scmp.eq.s32.totalorder %s16, 1
      %p67 = scmp.ne.s32.totalorder %s62, %s64
      %p68 = scmp.eq.s32.totalorder %s16, 0
      %p69 = por %p67, %p68
      %p70 = scmp.ne.s32.totalorder %s62, %s64
      %p71 = scmp.eq.s32.totalorder %s21, 1
      %p72 = por %p70, %p71
      %p73 = scmp.ne.s32.totalorder %s64, %s65
      %p74 = scmp.eq.s32.totalorder %s21, 0
      %p75 = por %p73, %p74
      %p76 = scmp.ne.s32.totalorder %s64, %s65
      %p77 = scmp.eq.s32.totalorder %s22, 1
      %p78 = por %p76, %p77
      %p80 = scmp.ne.s32.totalorder %s65, %s79
      %p81 = scmp.eq.s32.totalorder %s22, 0
      %p82 = por %p80, %p81
      %s84 = sadd.s32 %s83, 1
      %p87 = scmp.eq.s32.totalorder %s16, 1
      %p88 = scmp.ne.s32.totalorder %s83, %s85
      %p89 = scmp.eq.s32.totalorder %s16, 0
      %p90 = por %p88, %p89
      %p91 = scmp.ne.s32.totalorder %s83, %s85
      %p92 = scmp.eq.s32.totalorder %s21, 1
      %p93 = por %p91, %p92
      %p94 = scmp.ne.s32.totalorder %s85, %s86
      %p95 = scmp.eq.s32.totalorder %s21, 0
      %p96 = por %p94, %p95
      %p97 = scmp.ne.s32.totalorder %s85, %s86
      %p98 = scmp.eq.s32.totalorder %s22, 1
      %p99 = por %p97, %p98
      %p101 = scmp.ne.s32.totalorder %s86, %s100
      %p102 = scmp.eq.s32.totalorder %s22, 0
      %p103 = por %p101, %p102
      %s105 = sadd.s32 %s104, 1
      %p108 = scmp.eq.s32.totalorder %s16, 1
      %p109 = scmp.ne.s32.totalorder %s104, %s106
      %p110 = scmp.eq.s32.totalorder %s16, 0
      %p111 = por %p109, %p110
      %p112 = scmp.ne.s32.totalorder %s104, %s106
      %p113 = scmp.eq.s32.totalorder %s21, 1
      %p114 = por %p112, %p113
      %p115 = scmp.ne.s32.totalorder %s106, %s107
      %p116 = scmp.eq.s32.totalorder %s21, 0
      %p117 = por %p115, %p116
      %p118 = scmp.ne.s32.totalorder %s106, %s107
      %p119 = scmp.eq.s32.totalorder %s22, 1
      %p120 = por %p118, %p119
      %p122 = scmp.ne.s32.totalorder %s107, %s121
      %p123 = scmp.eq.s32.totalorder %s22, 0
      %p124 = por %p122, %p123
      %s125 = ssub.s32 %s24, %s31
      %p126 = scmp.eq.s32.totalorder %s125, 0
      %s128 = sadd.s32 %s127, 1
      %s129 = scalar_select %p126, %s127, %s128
      %p132 = pneg %p126
      %p133 = scmp.eq.s32.totalorder %s16, 1
      %p134 = por %p132, %p133
      %p135 = scmp.ne.s32.totalorder %s127, %s130
      %p136 = scmp.eq.s32.totalorder %s16, 0
      %p137 = por %p135, %p136
      %p138 = scmp.ne.s32.totalorder %s127, %s130
      %p139 = scmp.eq.s32.totalorder %s21, 1
      %p140 = por %p138, %p139
      %p141 = scmp.ne.s32.totalorder %s130, %s131
      %p142 = scmp.eq.s32.totalorder %s21, 0
      %p143 = por %p141, %p142
      %p144 = scmp.ne.s32.totalorder %s130, %s131
      %p145 = scmp.eq.s32.totalorder %s22, 1
      %p146 = por %p144, %p145
      %p148 = scmp.ne.s32.totalorder %s131, %s147
      %p149 = scmp.eq.s32.totalorder %s22, 0
      %p150 = por %p148, %p149
      %s151 = ssub.s32 %s24, %s31
      %p152 = scmp.eq.s32.totalorder %s151, 0
      %s154 = sadd.s32 %s153, 1
      %s155 = scalar_select %p152, %s153, %s154
      %p158 = pneg %p152
      %p159 = scmp.eq.s32.totalorder %s16, 1
      %p160 = por %p158, %p159
      %p161 = scmp.ne.s32.totalorder %s153, %s156
      %p162 = scmp.eq.s32.totalorder %s16, 0
      %p163 = por %p161, %p162
      %p164 = scmp.ne.s32.totalorder %s153, %s156
      %p165 = scmp.eq.s32.totalorder %s21, 1
      %p166 = por %p164, %p165
      %p167 = scmp.ne.s32.totalorder %s156, %s157
      %p168 = scmp.eq.s32.totalorder %s21, 0
      %p169 = por %p167, %p168
      %p170 = scmp.ne.s32.totalorder %s156, %s157
      %p171 = scmp.eq.s32.totalorder %s22, 1
      %p172 = por %p170, %p171
      %p174 = scmp.ne.s32.totalorder %s157, %s173
      %p175 = scmp.eq.s32.totalorder %s22, 0
      %p176 = por %p174, %p175
      %s177 = ssub.s32 %s23, %s35
      %s178 = ssub.s32 %s24, %s31
      %s179 = sor.u32 %s177, %s178
      %p180 = scmp.eq.s32.totalorder %s179, 0
      %s182 = sadd.s32 %s181, 1
      %s183 = scalar_select %p180, %s181, %s182
      %p186 = pneg %p180
      %p187 = scmp.eq.s32.totalorder %s16, 1
      %p188 = por %p186, %p187
      %p189 = scmp.ne.s32.totalorder %s181, %s184
      %p190 = scmp.eq.s32.totalorder %s16, 0
      %p191 = por %p189, %p190
      %p192 = scmp.ne.s32.totalorder %s181, %s184
      %p193 = scmp.eq.s32.totalorder %s21, 1
      %p194 = por %p192, %p193
      %p195 = scmp.ne.s32.totalorder %s184, %s185
      %p196 = scmp.eq.s32.totalorder %s21, 0
      %p197 = por %p195, %p196
      %p198 = scmp.ne.s32.totalorder %s184, %s185
      %p199 = scmp.eq.s32.totalorder %s22, 1
      %p200 = por %p198, %p199
      %p202 = scmp.ne.s32.totalorder %s185, %s201
      %p203 = scmp.eq.s32.totalorder %s22, 0
      %p204 = por %p202, %p203
      %p205 = scmp.le.s32.totalorder 1, %s16
      %p206 = scmp.lt.s32.totalorder %s16, 3
      %p207 = pnand %p205, %p206
      %p208 = pneg %p207
      // Predicated region
      $region9: #{tpu_custom_call.1} parent=5 // pred_check
        _
      $region10: #{tpu_custom_call.1} parent=5 // pred_check_branch
        %210 = sbr.rel (%p207) target = $region12
      $region11: #{tpu_custom_call.1} parent=5 // pred_region
        %s211 = ssub.s32 %s16, 1
        // Predicated region
        $region13: #{tpu_custom_call.1} parent=11 // pred_check
          %p212 = pneg %p75
        $region14: #{tpu_custom_call.1} parent=11 // pred_check_branch
          %214 = sbr.rel (%p212) target = $region16
        $region15: #{tpu_custom_call.1} parent=11 // pred_region
          %216 = vsyncadd [#allocation4], 0
          %s217 = sshll.u32 %s1, 4
          %s218 = int_to_ptr.hbm [resolvable:$true] %s217
          %s219 = sshll.u32 [#allocation3], 4
          %s220 = int_to_ptr.vmem [resolvable:$true] %s219
          %225 = dma.hbm_to_vmem [thread:$0]  %s218, 512, %s220, [#allocation4], 256, 256, 16
        $region16: #{tpu_custom_call.1} parent=11 // pred_fallthru
          _
        // Predicated region
        $region17: #{tpu_custom_call.1} parent=11 // pred_check
          %p226 = pneg %p96
        $region18: #{tpu_custom_call.1} parent=11 // pred_check_branch
          %228 = sbr.rel (%p226) target = $region20
        $region19: #{tpu_custom_call.1} parent=11 // pred_region
          _
        $region20: #{tpu_custom_call.1} parent=11 // pred_fallthru
          _
        // Predicated region
        $region21: #{tpu_custom_call.1} parent=11 // pred_check
          %p229 = pneg %p117
        $region22: #{tpu_custom_call.1} parent=11 // pred_check_branch
          %231 = sbr.rel (%p229) target = $region24
        $region23: #{tpu_custom_call.1} parent=11 // pred_region
          _
        $region24: #{tpu_custom_call.1} parent=11 // pred_fallthru
          _
        // Predicated region
        $region25: #{tpu_custom_call.1} parent=11 // pred_check
          %p232 = pneg %p143
        $region26: #{tpu_custom_call.1} parent=11 // pred_check_branch
          %234 = sbr.rel (%p232) target = $region28
        $region27: #{tpu_custom_call.1} parent=11 // pred_region
          %p235 = scmp.lt.s32.totalorder %s26, 0
          %s236 = scalar_select %p235, %s26, 0
          %s237 = smul.addr %s236, 8
          %s238 = scalar_lea.vmem %s4, %s237
        $region28: #{tpu_custom_call.1} parent=11 // pred_fallthru
          _
        // Predicated region
        $region29: #{tpu_custom_call.1} parent=11 // pred_check
          %p239 = pneg %p169
        $region30: #{tpu_custom_call.1} parent=11 // pred_check_branch
          %241 = sbr.rel (%p239) target = $region32
        $region31: #{tpu_custom_call.1} parent=11 // pred_region
          %p242 = scmp.lt.s32.totalorder %s26, 0
          %s243 = scalar_select %p242, %s26, 0
          %s244 = smul.addr %s243, 8
          %s245 = scalar_lea.vmem %s5, %s244
        $region32: #{tpu_custom_call.1} parent=11 // pred_fallthru
          _
      $region12: #{tpu_custom_call.1} parent=5 // pred_fallthru
        _
      %p246 = scmp.lt.s32.totalorder %s16, 2
      // Predicated region
      $region33: #{tpu_custom_call.1} parent=5 // pred_check
        %p247 = pneg %p246
      $region34: #{tpu_custom_call.1} parent=5 // pred_check_branch
        %249 = sbr.rel (%p247) target = $region36
      $region35: #{tpu_custom_call.1} parent=5 // pred_region
        // Predicated region
        $region37: #{tpu_custom_call.1} parent=35 // pred_check
          %p250 = pneg %p48
        $region38: #{tpu_custom_call.1} parent=35 // pred_check_branch
          %252 = sbr.rel (%p250) target = $region40
        $region39: #{tpu_custom_call.1} parent=35 // pred_region
          %p253 = scmp.lt.s32.totalorder %s23, 1
          %s254 = scalar_select %p253, %s23, 1
          %s255 = smul.addr %s254, 2
          %s256 = smul.addr %s255, 4
          %s257 = scalar_lea.vmem %s0, %s256
        $region40: #{tpu_custom_call.1} parent=35 // pred_fallthru
          _
      $region36: #{tpu_custom_call.1} parent=5 // pred_fallthru
        _
      %p258 = scmp.le.s32.totalorder 1, %s16
      %p259 = scmp.lt.s32.totalorder %s16, 3
      %p260 = pnand %p258, %p259
      %p261 = pneg %p260
      // Predicated region
      $region41: #{tpu_custom_call.1} parent=5 // pred_check
        _
      $region42: #{tpu_custom_call.1} parent=5 // pred_check_branch
        %263 = sbr.rel (%p260) target = $region44
      $region43: #{tpu_custom_call.1} parent=5 // pred_region
        %s264 = ssub.s32 %s16, 1
        // Predicated region
        $region45: #{tpu_custom_call.1} parent=43 // pred_check
          %p265 = pneg %p75
        $region46: #{tpu_custom_call.1} parent=43 // pred_check_branch
          %267 = sbr.rel (%p265) target = $region48
        $region47: #{tpu_custom_call.1} parent=43 // pred_region
          %269 = dma.done [#allocation4], 512
        $region48: #{tpu_custom_call.1} parent=43 // pred_fallthru
          _
        %p270 = scmp.lt.s32.totalorder %s25, 1
        %s271 = scalar_select %p270, %s25, 1
        %s272 = smul.addr %s271, 2
        %s273 = smul.addr %s272, 4
        %s274 = scalar_lea.vmem %s0, %s273
        %p275 = pneg %p54
        %p276 = pneg %p51
        %p277 = pneg %p75
        %p278 = pneg %p72
        %p279 = pneg %p96
        %p280 = pneg %p93
        %p281 = pneg %p117
        %p282 = pneg %p114
        %p283 = scmp.lt.s32.totalorder %s26, 0
        %s284 = scalar_select %p283, %s26, 0
        %s285 = smul.addr %s284, 8
        %s286 = scalar_lea.vmem %s4, %s285
        %p287 = pneg %p143
        %p288 = pneg %p140
        %p289 = scmp.lt.s32.totalorder %s26, 0
        %s290 = scalar_select %p289, %s26, 0
        %s291 = smul.addr %s290, 8
        %s292 = scalar_lea.vmem %s5, %s291
        %p293 = pneg %p169
        %p294 = pneg %p166
        %p295 = pneg %p197
        %p296 = pneg %p194
        %s297 = sand.u32 %s184, 1
        %s298 = scalar_lea.sflag [#allocation5], %s297
        %s299 = sand.u32 %s184, 1
        %s300 = smul.addr %s299, 16
        %s301 = scalar_lea.vmem [#allocation6], %s300
        %p302 = scmp.lt.s32.totalorder %s25, 1
        %s303 = scalar_select %p302, %s25, 1
        %s304 = smul.addr %s303, 2
        %s305 = smul.addr %s304, 4
        %s306 = scalar_lea.vmem %s0, %s305
        %p307 = scmp.lt.s32.totalorder %s26, 0
        %s308 = scalar_select %p307, %s26, 0
        %s309 = smul.addr %s308, 8
        %s310 = scalar_lea.vmem %s4, %s309
        %p311 = scmp.lt.s32.totalorder %s26, 0
        %s312 = scalar_select %p311, %s26, 0
        %s313 = smul.addr %s312, 8
        %s314 = scalar_lea.vmem %s5, %s313
        %v315 = vld [vmem:[%s306] sm:$0xff]
        %316 = vst [vmem:[#allocation2] sm:$0xf] 0.0
        %317 = vst [vmem:[#allocation2 + $0xc] sm:$0xf] 0.0
        %318 = vst [vmem:[#allocation2 + $0x4] sm:$0xff] %v315
        %v319 = vld [vmem:[#allocation2] sm:$0xff]
        %v320 = vld [vmem:[#allocation2 + $0x8] sm:$0xf]
        %v321 = vld [vmem:[#allocation3] ss:$8 sm:$0x3]
        %v323 = vperm.slane %v321, 0
        %v324 = vperm.slane %v321, 1
        %v325 = vrot.slane %v324, 4
        %vm326 = vcmask 1043456
        %v327 = vsel %vm326, %v323, %v325
        %328 = vrot.lane.b32.xlu0 %v327, 111
        %v329 = vpop.permute.xlu0 %328
        %v330 = vrot.slane %v329, 4
        %vm331 = vcmask 908288
        %v332 = vsel %vm331, %v330, %v329
        %v335 = vmul.f32 %v319, %v332
        %v336 = vmul.f32 %v320, %v330
        %v337 = vld [vmem:[%s2] sm:$0xf]
        %339 = vset.pattern.permute.xlu0 0
        %340 = vperm.xlu0 %339, %v337
        %v341 = vpop.permute.xlu0 %340
        %v343 = vunpack.c.l.s4 839922192
        %v344 = vunpack.c.0.s8 %v343
        %v345 = vperm.slane %v341, %v344
        %v347 = vmul.f32 %v335, %v345
        %v348 = vmul.f32 %v336, %v345
        %v349 = vadd.f32 %v347, 0.0
        %v350 = vadd.f32 %v348, 0.0
        %351 = vset.pattern.permute.xlu0 1
        %352 = vperm.xlu0 %351, %v337
        %v353 = vpop.permute.xlu0 %352
        %v355 = vunpack.c.l.s4 839922192
        %v356 = vunpack.c.0.s8 %v355
        %v357 = vperm.slane %v353, %v356
        %v359 = vmul.f32 %v319, %v357
        %v360 = vmul.f32 %v320, %v357
        %363 = vrot.lane.b32.xlu0 %v359, 127
        %v364 = vpop.permute.xlu0 %363
        %365 = vrot.lane.b32.xlu0 %v360, 127
        %v366 = vpop.permute.xlu0 %365
        %v367 = vrot.slane %v364, 4
        %v368 = vrot.slane %v366, 4
        %v369 = vsel %vm326, %v367, %v368
        %vm370 = vcmask 1039360
        %v371 = vsel %vm370, %v364, %v369
        %v374 = vadd.f32 %v349, %v371
        %v375 = vadd.f32 %v350, %v366
        %s376 = scalar_lea.vmem [#allocation3], 2
        %v377 = vld [vmem:[%s376] ss:$8 sm:$0x3]
        %v379 = vperm.slane %v377, 0
        %v380 = vperm.slane %v377, 1
        %v381 = vrot.slane %v380, 4
        %v382 = vsel %vm326, %v379, %v381
        %383 = vrot.lane.b32.xlu0 %v382, 113
        %v384 = vpop.permute.xlu0 %383
        %v385 = vrot.slane %v384, 4
        %vm386 = vcmask 924672
        %v387 = vsel %vm386, %v385, %v384
        %v390 = vmul.f32 %v319, %v387
        %v391 = vmul.f32 %v320, %v385
        %392 = vset.pattern.permute.xlu0 2
        %393 = vperm.xlu0 %392, %v337
        %v394 = vpop.permute.xlu0 %393
        %v396 = vunpack.c.l.s4 839922192
        %v397 = vunpack.c.0.s8 %v396
        %v398 = vperm.slane %v394, %v397
        %v400 = vmul.f32 %v390, %v398
        %v401 = vmul.f32 %v391, %v398
        %404 = vrot.lane.b32.xlu0 %v400, 126
        %v405 = vpop.permute.xlu0 %404
        %406 = vrot.lane.b32.xlu0 %v401, 126
        %v407 = vpop.permute.xlu0 %406
        %v408 = vrot.slane %v405, 4
        %v409 = vrot.slane %v407, 4
        %v410 = vsel %vm326, %v408, %v409
        %vm411 = vcmask 1031168
        %v412 = vsel %vm411, %v405, %v410
        %v415 = vadd.f32 %v374, %v412
        %v416 = vadd.f32 %v375, %v407
        %s417 = scalar_lea.vmem [#allocation3], 3
        %v418 = vld [vmem:[%s417] ss:$8 sm:$0x3]
        %v420 = vperm.slane %v418, 0
        %v421 = vperm.slane %v418, 1
        %v422 = vrot.slane %v421, 4
        %v423 = vsel %vm326, %v420, %v422
        %424 = vrot.lane.b32.xlu0 %v423, 127
        %v425 = vpop.permute.xlu0 %424
        %v426 = vrot.slane %v425, 4
        %v427 = vsel %vm370, %v426, %v425
        %v430 = vmul.f32 %v319, %v427
        %v431 = vmul.f32 %v320, %v426
        %432 = vset.pattern.permute.xlu0 3
        %433 = vperm.xlu0 %432, %v337
        %v434 = vpop.permute.xlu0 %433
        %v436 = vunpack.c.l.s4 839922192
        %v437 = vunpack.c.0.s8 %v436
        %v438 = vperm.slane %v434, %v437
        %v440 = vmul.f32 %v430, %v438
        %v441 = vmul.f32 %v431, %v438
        %444 = vrot.lane.b32.xlu0 %v440, 112
        %v445 = vpop.permute.xlu0 %444
        %446 = vrot.lane.b32.xlu0 %v441, 112
        %v447 = vpop.permute.xlu0 %446
        %v448 = vrot.slane %v445, 4
        %v449 = vrot.slane %v447, 4
        %v450 = vsel %vm326, %v448, %v449
        %vm451 = vcmask 916480
        %v452 = vsel %vm451, %v445, %v450
        %v455 = vadd.f32 %v415, %v452
        %v456 = vadd.f32 %v416, %v447
        %v457 = vld [vmem:[#allocation2 + $0x4] sm:$0xff]
        %458 = vset.pattern.permute.xlu0 4
        %459 = vperm.xlu0 %458, %v337
        %v460 = vpop.permute.xlu0 %459
        %v462 = vunpack.c.l.s4 839922192
        %v463 = vunpack.c.0.s8 %v462
        %v464 = vperm.slane %v460, %v463
        %v466 = vmul.f32 %v457, %v464
        %468 = vrot.lane.b32.xlu0 %v466, 111
        %v469 = vpop.permute.xlu0 %468
        %v470 = vrot.slane %v469, 4
        %v471 = vsel %vm331, %v470, %v469
        %v474 = vadd.f32 %v455, %v471
        %v475 = vadd.f32 %v456, %v470
        %v476 = vld [vmem:[#allocation2 + $0x4] sm:$0xff]
        %v477 = vld [vmem:[#allocation2 + $0xc] sm:$0xf]
        %s478 = scalar_lea.vmem [#allocation3], 5
        %v479 = vld [vmem:[%s478] ss:$8 sm:$0x3]
        %v481 = vperm.slane %v479, 0
        %v482 = vperm.slane %v479, 1
        %v483 = vrot.slane %v482, 4
        %v484 = vsel %vm326, %v481, %v483
        %485 = vrot.lane.b32.xlu0 %v484, 1
        %v486 = vpop.permute.xlu0 %485
        %v487 = vrot.slane %v486, 4
        %vm488 = vcmask 7168
        %v489 = vsel %vm488, %v487, %v486
        %v492 = vmul.f32 %v476, %v489
        %v493 = vmul.f32 %v477, %v487
        %494 = vset.pattern.permute.xlu0 5
        %495 = vperm.xlu0 %494, %v337
        %v496 = vpop.permute.xlu0 %495
        %v498 = vunpack.c.l.s4 839922192
        %v499 = vunpack.c.0.s8 %v498
        %v500 = vperm.slane %v496, %v499
        %v502 = vmul.f32 %v492, %v500
        %v503 = vmul.f32 %v493, %v500
        %506 = vrot.lane.b32.xlu0 %v502, 110
        %v507 = vpop.permute.xlu0 %506
        %508 = vrot.lane.b32.xlu0 %v503, 110
        %v509 = vpop.permute.xlu0 %508
        %v510 = vrot.slane %v507, 4
        %vm511 = vcmask 900096
        %v512 = vsel %vm511, %v510, %v507
        %v513 = vsel %vm511, %v510, %v509
        %v516 = vadd.f32 %v474, %v512
        %v517 = vadd.f32 %v475, %v513
        %s518 = scalar_lea.vmem [#allocation3], 6
        %v519 = vld [vmem:[%s518] ss:$8 sm:$0x3]
        %v521 = vperm.slane %v519, 0
        %v522 = vperm.slane %v519, 1
        %v523 = vrot.slane %v522, 4
        %v524 = vsel %vm326, %v521, %v523
        %525 = vrot.lane.b32.xlu0 %v524, 15
        %v526 = vpop.permute.xlu0 %525
        %v527 = vrot.slane %v526, 4
        %vm528 = vcmask 121856
        %v529 = vsel %vm528, %v527, %v526
        %v532 = vmul.f32 %v476, %v529
        %v533 = vmul.f32 %v477, %v527
        %534 = vset.pattern.permute.xlu0 6
        %535 = vperm.xlu0 %534, %v337
        %v536 = vpop.permute.xlu0 %535
        %v538 = vunpack.c.l.s4 839922192
        %v539 = vunpack.c.0.s8 %v538
        %v540 = vperm.slane %v536, %v539
        %v542 = vmul.f32 %v532, %v540
        %v543 = vmul.f32 %v533, %v540
        %546 = vrot.lane.b32.xlu0 %v542, 96
        %v547 = vpop.permute.xlu0 %546
        %548 = vrot.lane.b32.xlu0 %v543, 96
        %v549 = vpop.permute.xlu0 %548
        %v550 = vrot.slane %v547, 4
        %vm551 = vcmask 785408
        %v552 = vsel %vm551, %v550, %v547
        %v553 = vsel %vm551, %v550, %v549
        %v556 = vadd.f32 %v516, %v552
        %v557 = vadd.f32 %v517, %v553
        %558 = vset.pattern.permute.xlu0 7
        %559 = vperm.xlu0 %558, %v337
        %v560 = vpop.permute.xlu0 %559
        %v562 = vunpack.c.l.s4 839922192
        %v563 = vunpack.c.0.s8 %v562
        %v564 = vperm.slane %v560, %v563
        %v566 = vmul.f32 %v476, %v564
        %v567 = vmul.f32 %v477, %v564
        %570 = vrot.lane.b32.xlu0 %v566, 95
        %v571 = vpop.permute.xlu0 %570
        %572 = vrot.lane.b32.xlu0 %v567, 95
        %v573 = vpop.permute.xlu0 %572
        %v574 = vrot.slane %v571, 4
        %vm575 = vcmask 777216
        %v576 = vsel %vm575, %v574, %v571
        %v577 = vsel %vm575, %v574, %v573
        %v580 = vadd.f32 %v556, %v576
        %v581 = vadd.f32 %v557, %v577
        %s582 = scalar_lea.vmem [#allocation3], 16
        %v583 = vld [vmem:[%s582] ss:$8 sm:$0x3]
        %v585 = vperm.slane %v583, 0
        %v586 = vperm.slane %v583, 1
        %v587 = vrot.slane %v586, 4
        %v588 = vsel %vm326, %v585, %v587
        %589 = vrot.lane.b32.xlu0 %v588, 17
        %v590 = vpop.permute.xlu0 %589
        %v591 = vrot.slane %v590, 4
        %vm592 = vcmask 138240
        %v593 = vsel %vm592, %v591, %v590
        %v596 = vmul.f32 %v476, %v593
        %v597 = vmul.f32 %v477, %v591
        %598 = vset.pattern.permute.xlu0 8
        %599 = vperm.xlu0 %598, %v337
        %v600 = vpop.permute.xlu0 %599
        %v602 = vunpack.c.l.s4 839922192
        %v603 = vunpack.c.0.s8 %v602
        %v604 = vperm.slane %v600, %v603
        %v606 = vmul.f32 %v596, %v604
        %v607 = vmul.f32 %v597, %v604
        %610 = vrot.lane.b32.xlu0 %v606, 94
        %v611 = vpop.permute.xlu0 %610
        %612 = vrot.lane.b32.xlu0 %v607, 94
        %v613 = vpop.permute.xlu0 %612
        %v614 = vrot.slane %v611, 4
        %vm615 = vcmask 769024
        %v616 = vsel %vm615, %v614, %v611
        %v617 = vsel %vm615, %v614, %v613
        %v620 = vadd.f32 %v580, %v616
        %v621 = vadd.f32 %v581, %v617
        %v622 = vld [vmem:[%s3] sm:$0xf]
        %624 = vset.pattern.permute.xlu0 0
        %625 = vperm.xlu0 %624, %v622
        %v626 = vpop.permute.xlu0 %625
        %v628 = vunpack.c.l.s4 839922192
        %v629 = vunpack.c.0.s8 %v628
        %v630 = vperm.slane %v626, %v629
        %v632 = vadd.f32 %v620, %v630
        %v633 = vadd.f32 %v621, %v630
        %v634 = vmax.f32 %v632, 0.0
        %v635 = vmax.f32 %v633, 0.0
        %v636 = vld [vmem:[%s310] sm:$0xff]
        %638 = vset.pattern.permute.xlu0 0
        %639 = vperm.xlu0 %638, %v636
        %v640 = vpop.permute.xlu0 %639
        %v644 = vperm.slane %v634, 0
        %v645 = vperm.slane %v634, 4
        %v646 = vperm.slane %v635, 0
        %v650 = vperm.slane %v644, 0
        %v651 = vperm.slane %v645, 0
        %v652 = vperm.slane %v646, 0
        %v653 = vmul.f32 %v640, %v650
        %v654 = vmul.f32 %v640, %v651
        %v655 = vmul.f32 %v640, %v652
        %v656 = vadd.f32 %v653, 0.0
        %v657 = vadd.f32 %v654, 0.0
        %v658 = vadd.f32 %v655, 0.0
        %659 = vset.pattern.permute.xlu0 1
        %660 = vperm.xlu0 %659, %v636
        %v661 = vpop.permute.xlu0 %660
        %v663 = vperm.slane %v634, 1
        %v664 = vperm.slane %v634, 5
        %v665 = vperm.slane %v635, 1
        %v669 = vperm.slane %v663, 1
        %v670 = vperm.slane %v664, 1
        %v671 = vperm.slane %v665, 1
        %v672 = vmul.f32 %v661, %v669
        %v673 = vmul.f32 %v661, %v670
        %v674 = vmul.f32 %v661, %v671
        %v675 = vadd.f32 %v656, %v672
        %v676 = vadd.f32 %v657, %v673
        %v677 = vadd.f32 %v658, %v674
        %678 = vset.pattern.permute.xlu0 2
        %679 = vperm.xlu0 %678, %v636
        %v680 = vpop.permute.xlu0 %679
        %v682 = vperm.slane %v634, 2
        %v683 = vperm.slane %v634, 6
        %v684 = vperm.slane %v635, 2
        %v688 = vperm.slane %v682, 2
        %v689 = vperm.slane %v683, 2
        %v690 = vperm.slane %v684, 2
        %v691 = vmul.f32 %v680, %v688
        %v692 = vmul.f32 %v680, %v689
        %v693 = vmul.f32 %v680, %v690
        %v694 = vadd.f32 %v675, %v691
        %v695 = vadd.f32 %v676, %v692
        %v696 = vadd.f32 %v677, %v693
        %697 = vset.pattern.permute.xlu0 3
        %698 = vperm.xlu0 %697, %v636
        %v699 = vpop.permute.xlu0 %698
        %v701 = vperm.slane %v634, 3
        %v702 = vperm.slane %v634, 7
        %v703 = vperm.slane %v635, 3
        %v707 = vperm.slane %v701, 3
        %v708 = vperm.slane %v702, 3
        %v709 = vperm.slane %v703, 3
        %v710 = vmul.f32 %v699, %v707
        %v711 = vmul.f32 %v699, %v708
        %v712 = vmul.f32 %v699, %v709
        %v713 = vadd.f32 %v694, %v710
        %v714 = vadd.f32 %v695, %v711
        %v715 = vadd.f32 %v696, %v712
        %v716 = vld [vmem:[%s314] sm:$0xff]
        %718 = vset.pattern.permute.xlu0 0
        %719 = vperm.xlu0 %718, %v716
        %v720 = vpop.permute.xlu0 %719
        %v722 = vadd.f32 %v713, %v720
        %v723 = vadd.f32 %v714, %v720
        %v724 = vadd.f32 %v715, %v720
        %v725 = vmax.f32 %v722, 0.0
        %v726 = vmax.f32 %v723, 0.0
        %v727 = vmax.f32 %v724, 0.0
        %731 = vrot.lane.b32.xlu0 %v725, 17
        %v732 = vpop.permute.xlu0 %731
        %733 = vrot.lane.b32.xlu0 %v726, 17
        %v734 = vpop.permute.xlu0 %733
        %735 = vrot.lane.b32.xlu0 %v727, 17
        %v736 = vpop.permute.xlu0 %735
        %v737 = vsel %vm592, %v732, %v734
        %v738 = vsel %vm592, %v734, %v736
        %741 = vst [vmem:[%s301] sm:$0xff] %v737
        %742 = vst [vmem:[%s301 + $0x8] sm:$0xff] %v738
        %s743 = sand.u32 %s184, 1
        %s744 = scalar_lea.sflag [#allocation5], %s743
        %s745 = sand.u32 %s184, 1
        %s746 = smul.addr %s745, 16
        %s747 = scalar_lea.vmem [#allocation6], %s746
        // Predicated region
        $region49: #{tpu_custom_call.1} parent=43 // pred_check
          %p748 = pneg %p194
        $region50: #{tpu_custom_call.1} parent=43 // pred_check_branch
          %750 = sbr.rel (%p748) target = $region52
        $region51: #{tpu_custom_call.1} parent=43 // pred_region
          %752 = vsyncadd %s744, 0
          %s753 = smul.addr %s26, 2
          %s754 = smul.addr %s25, 2
          %s755 = sadd.s32 %s753, %s754
          %s756 = smul.addr %s755, 8
          %s757 = scalar_lea.hbm %s6, %s756
          %s759 = sshll.u32 %s747, 4
          %s760 = int_to_ptr.vmem [resolvable:$true] %s759
          %s761 = sshll.u32 %s757, 4
          %s762 = int_to_ptr.hbm [resolvable:$true] %s761
          %764 = dma.vmem_to_hbm [thread:$0]  %s760, 256, %s762, %s744
        $region52: #{tpu_custom_call.1} parent=43 // pred_fallthru
          _
      $region44: #{tpu_custom_call.1} parent=5 // pred_fallthru
        _
      %p765 = scmp.le.s32.totalorder 2, %s16
      // Predicated region
      $region53: #{tpu_custom_call.1} parent=5 // pred_check
        %p766 = pneg %p765
      $region54: #{tpu_custom_call.1} parent=5 // pred_check_branch
        %768 = sbr.rel (%p766) target = $region56
      $region55: #{tpu_custom_call.1} parent=5 // pred_region
        %s769 = ssub.s32 %s16, 2
        // Predicated region
        $region57: #{tpu_custom_call.1} parent=55 // pred_check
          %p770 = pneg %p200
        $region58: #{tpu_custom_call.1} parent=55 // pred_check_branch
          %772 = sbr.rel (%p770) target = $region60
        $region59: #{tpu_custom_call.1} parent=55 // pred_region
          %s773 = sand.u32 %s185, 1
          %s774 = scalar_lea.sflag [#allocation5], %s773
          %s775 = sand.u32 %s185, 1
          %s776 = smul.addr %s775, 16
          %s777 = scalar_lea.vmem [#allocation6], %s776
          %779 = dma.done %s774, 256
        $region60: #{tpu_custom_call.1} parent=55 // pred_fallthru
          _
      $region56: #{tpu_custom_call.1} parent=5 // pred_fallthru
        _
    $region6: #{tpu_custom_call.1} parent=1 // loop_footer
      %s20 = sadd.s32 1, %s16
    $region7: #{tpu_custom_call.1} parent=1 // loop_footer_branch
      %15 = sbr.rel target = $region3
    $region8: #{tpu_custom_call.1} parent=1 // loop_exit
      _
    %780 = vsyncpa [#allocation4], 1
    %s781 = scalar_lea.sflag [#allocation4], 1
    %782 = vsyncpa %s781, 1
    %783 = vsyncpa [#allocation5], 1
    %s784 = scalar_lea.sflag [#allocation5], 1
    %785 = vsyncpa %s784, 1

</llo_original>
